<compile_context>
chip_gen: v5e
topology: v5e:2x2
jax: 0.10.0
libtpu: 0.0.40
codegen_flags: <defaults>
</compile_context>

<pallas_src>
import functools

import jax
import jax.numpy as jnp
from jax.experimental import pallas as pl
from jax.experimental.pallas import tpu as pltpu

LN_EPS = 1e-5  # PyTorch nn.LayerNorm default
LANE = 128


def _round_up(n, m):
    return ((n + m - 1) // m) * m


def _cdiv(a, b):
    return -(-a // b)


def _pad2(a, rows, cols):
    out = jnp.zeros((rows, cols), a.dtype)
    return out.at[: a.shape[0], : a.shape[1]].set(a)


# ---------------------------------------------------------------------------
# In-kernel building block: one MLPResidualBlock (eval, full_preactivation=False)
# ---------------------------------------------------------------------------
def _residual_block(x, g, be, b1, b2, w1, w2, wd, bd, n_feat):
    """x: f32 (TM, pad_in) with padded lanes exactly zero. Returns (TM, pad_out)."""
    inv_n = 1.0 / float(n_feat)
    # LayerNorm statistics over the real feature count; padded lanes contribute 0.
    s1 = jnp.sum(x, axis=-1, keepdims=True)
    s2 = jnp.sum(x * x, axis=-1, keepdims=True)
    mean = s1 * inv_n
    var = s2 * inv_n - mean * mean          # E[x^2] - E[x]^2 (no lane mask needed)
    xn = (x - mean) * jax.lax.rsqrt(var + LN_EPS)
    xn = xn * g + be                        # gamma/beta zero in padded lanes -> 0 there

    # fc_1 -> SiLU -> fc_2 : bf16 MXU matmuls, f32 accumulation.
    h = jnp.dot(xn.astype(jnp.bfloat16), w1,
                preferred_element_type=jnp.float32) + b1
    # SiLU: exp on the EUP + exact reciprocal (approx=False for torch parity).
    h = h * pl.reciprocal(1.0 + jnp.exp(-h), approx=False)
    h = jnp.dot(h.astype(jnp.bfloat16), w2,
                preferred_element_type=jnp.float32) + b2

    # Skip path on the *raw* input x (full_preactivation=False).
    if wd is not None:
        ident = jnp.dot(x.astype(jnp.bfloat16), wd,
                        preferred_element_type=jnp.float32) + bd
    else:
        ident = x
    return h + ident


# ---------------------------------------------------------------------------
# Fused kernel: adaptor block + fori_loop over identical middle blocks + final.
# ---------------------------------------------------------------------------
def _build_fused_kernel(meta):
    skip_first = meta["skip_first"]
    skip_final = meta["skip_final"]
    num_middle = meta["num_middle"]
    in_dim = meta["input_dimension"]
    fc = meta["fc_task_dim"]

    def kernel(*refs):
        idx = 0
        x_ref = refs[idx]; idx += 1
        vin0, vout0, w1_0, w2_0 = refs[idx:idx + 4]; idx += 4
        wd_0 = None
        if skip_first:
            wd_0 = refs[idx]; idx += 1
        if num_middle > 0:
            midv, midw1, midw2 = refs[idx:idx + 3]; idx += 3
        vinF, voutF, w1_F, w2_F = refs[idx:idx + 4]; idx += 4
        wd_F = None
        if skip_final:
            wd_F = refs[idx]; idx += 1
        o_ref = refs[-1]

        x = x_ref[...].astype(jnp.float32)

        # ---- block 0 (adaptor): input_dimension -> fc_task_dim ----
        vi = vin0[...]
        vo = vout0[...]
        x = _residual_block(
            x, vi[0:1], vi[1:2], vo[0:1], vo[1:2],
            w1_0[...], w2_0[...],
            wd_0[...] if skip_first else None,
            vo[2:3] if skip_first else None,
            n_feat=in_dim)

        # ---- middle blocks: fc_task_dim -> fc_task_dim, identity skip ----
        if num_middle > 0:
            def mid_body(l, xc):
                v = midv[l]                      # (8, pad_mid): g, beta, b1, b2
                return _residual_block(
                    xc, v[0:1], v[1:2], v[2:3], v[3:4],
                    midw1[l], midw2[l], None, None, n_feat=fc)

            x = jax.lax.fori_loop(0, num_middle, mid_body, x,
                                  unroll=(num_middle <= 4))

        # ---- final block: fc_task_dim -> total_outputs ----
        vi = vinF[...]
        vo = voutF[...]
        x = _residual_block(
            x, vi[0:1], vi[1:2], vo[0:1], vo[1:2],
            w1_F[...], w2_F[...],
            wd_F[...] if skip_final else None,
            vo[2:3] if skip_final else None,
            n_feat=fc)

        o_ref[...] = x.astype(o_ref.dtype)

    return kernel


# ---------------------------------------------------------------------------
# Parameter construction (deterministic, synthetic), zero-padded to lane width.
# Packed layout per block:
#   vin  (8, pad_in):  row0 = LN gamma, row1 = LN beta
#   vout (8, pad_out): row0 = fc_1 bias, row1 = fc_2 bias, row2 = downsample bias
#   weights stored transposed as (in, out) == PyTorch weight.T, bf16 for the MXU.
# Middle blocks stacked along a leading L axis.
# ---------------------------------------------------------------------------
def _make_edge_block(key, in_f, out_f, pad_in, pad_out):
    has_skip = in_f != out_f
    k1, k2, k3 = jax.random.split(key, 3)
    w1 = jax.random.normal(k1, (in_f, out_f), jnp.float32) * 0.05
    w2 = jax.random.normal(k2, (out_f, out_f), jnp.float32) * 0.05

    vin = jnp.zeros((8, pad_in), jnp.float32).at[0, :in_f].set(1.0)
    vout = (jnp.zeros((8, pad_out), jnp.float32)
            .at[0, :out_f].set(0.01)
            .at[1, :out_f].set(-0.01))

    blk = {
        "vin": vin,
        "vout": vout,
        "w1": _pad2(w1, pad_in, pad_out).astype(jnp.bfloat16),
        "w2": _pad2(w2, pad_out, pad_out).astype(jnp.bfloat16),
    }
    if has_skip:
        wd = jax.random.normal(k3, (in_f, out_f), jnp.float32) * 0.05
        blk["wd"] = _pad2(wd, pad_in, pad_out).astype(jnp.bfloat16)
    return blk, has_skip


def _make_middle_stack(keys, fc, pad_mid):
    base_vec = (jnp.zeros((8, pad_mid), jnp.float32)
                .at[0, :fc].set(1.0)      # LN gamma (beta row stays 0)
                .at[2, :fc].set(0.01)     # fc_1 bias
                .at[3, :fc].set(-0.01))   # fc_2 bias
    vecs, w1s, w2s = [], [], []
    for k in keys:
        k1, k2 = jax.random.split(k)
        w1 = jax.random.normal(k1, (fc, fc), jnp.float32) * 0.05
        w2 = jax.random.normal(k2, (fc, fc), jnp.float32) * 0.05
        vecs.append(base_vec)
        w1s.append(_pad2(w1, pad_mid, pad_mid).astype(jnp.bfloat16))
        w2s.append(_pad2(w2, pad_mid, pad_mid).astype(jnp.bfloat16))
    return {"vecs": jnp.stack(vecs), "w1": jnp.stack(w1s), "w2": jnp.stack(w2s)}


def build_shared_residual_mlp_params(key, input_dimension, fc_task_dim,
                                     num_layers, total_outputs):
    pad_in0 = _round_up(input_dimension, LANE)
    pad_mid = _round_up(fc_task_dim, LANE)
    pad_out = _round_up(total_outputs, LANE)
    num_middle = num_layers - 1
    keys = jax.random.split(key, num_layers + 1)

    first, skip_first = _make_edge_block(
        keys[0], input_dimension, fc_task_dim, pad_in0, pad_mid)
    mid = (_make_middle_stack(list(keys[1:num_layers]), fc_task_dim, pad_mid)
           if num_middle > 0 else None)
    final, skip_final = _make_edge_block(
        keys[num_layers], fc_task_dim, total_outputs, pad_mid, pad_out)

    params = {"first": first, "mid": mid, "final": final}
    meta = dict(
        input_dimension=input_dimension, fc_task_dim=fc_task_dim,
        total_outputs=total_outputs,
        pad_in0=pad_in0, pad_mid=pad_mid, pad_out=pad_out,
        num_middle=num_middle, skip_first=skip_first, skip_final=skip_final)
    return params, meta


# ---------------------------------------------------------------------------
# Forward: one fused pallas_call -> slice/split per target in the wrapper.
# ---------------------------------------------------------------------------
def _const_spec(shape):
    """Grid-invariant, single-buffered resident parameter (constant index_map)."""
    if len(shape) == 2:
        idx = lambda i: (0, 0)
    else:
        idx = lambda i: (0, 0, 0)
    return pl.BlockSpec(shape, idx, pipeline_mode=pl.Buffered(1))


def shared_residual_mlp_output_forward(inputs, params, *, meta,
                                       target_names, target_sizes):
    B, in_dim = inputs.shape
    assert in_dim == meta["input_dimension"]
    pad_in0 = meta["pad_in0"]
    pad_out = meta["pad_out"]
    pad_mid = meta["pad_mid"]
    total_outputs = sum(target_sizes)

    # Batch tiling: sublane-aligned, >=2 tiles when possible (v7x dual-TC),
    # TM capped at 512 (big enough for v5e/v6e roofline, v7x-VMEM safe).
    B8 = _round_up(B, 8)
    if B8 <= 8:
        ntiles, TM = 1, B8
    else:
        ntiles = max(2, _cdiv(B8, 512))
        TM = _round_up(_cdiv(B8, ntiles), 8)
    B_pad = ntiles * TM

    # Padded activation staged in bf16 (halves streamed bytes); f32 in-kernel.
    x = jnp.zeros((B_pad, pad_in0), jnp.bfloat16)
    x = x.at[:B, :in_dim].set(inputs.astype(jnp.bfloat16))

    flat = [x]
    in_specs = [pl.BlockSpec((TM, pad_in0), lambda i: (i, 0))]

    def add_param(arr):
        flat.append(arr)
        in_specs.append(_const_spec(arr.shape))

    fb = params["first"]
    for nm in ("vin", "vout", "w1", "w2"):
        add_param(fb[nm])
    if meta["skip_first"]:
        add_param(fb["wd"])
    if meta["num_middle"] > 0:
        mb = params["mid"]
        for nm in ("vecs", "w1", "w2"):
            add_param(mb[nm])
    lb = params["final"]
    for nm in ("vin", "vout", "w1", "w2"):
        add_param(lb[nm])
    if meta["skip_final"]:
        add_param(lb["wd"])

    # VMEM budget: single-buffered params + double-buffered I/O tiles + temps.
    param_bytes = sum(int(a.size) * a.dtype.itemsize for a in flat[1:])
    io_bytes = 2 * TM * pad_in0 * 2 + 2 * TM * pad_out * 4
    act_bytes = 6 * TM * max(pad_in0, pad_mid, pad_out) * 4
    budget = param_bytes + io_bytes + act_bytes + (2 << 20)
    try:
        phys_vmem = int(getattr(pltpu.get_tpu_info(), "vmem_capacity_bytes",
                                64 << 20))
    except Exception:
        phys_vmem = 64 << 20            # assume tightest (v7x) if query fails
    cap = max(16 << 20, phys_vmem - (20 << 20))   # leave headroom for compiler scratch
    vmem_limit = int(min(cap, max(budget, 16 << 20)))

    out = pl.pallas_call(
        _build_fused_kernel(meta),
        out_shape=jax.ShapeDtypeStruct((B_pad, pad_out), jnp.float32),
        grid=(B_pad // TM,),
        in_specs=in_specs,
        out_specs=pl.BlockSpec((TM, pad_out), lambda i: (i, 0)),
        compiler_params=pltpu.CompilerParams(
            dimension_semantics=("parallel",),
            vmem_limit_bytes=vmem_limit,
        ),
    )(*flat)

    # Lane-dense kernel output; slice off padding and split per target here.
    shared = out[:B, :total_outputs]
    outputs = {}
    offset = 0
    for name, size in zip(target_names, target_sizes):
        outputs[name] = shared[:, offset:offset + size]
        offset += size
    return outputs


# ---------------------------------------------------------------------------
if __name__ == "__main__":
    # Small, module-consistent shapes.
    batch = 8
    input_dimension = 48
    fc_task_dim = 32
    layers = [2]  # model_config.layers -> 2 shared residual blocks (+ final block)
    num_outputs_per_target = {"height": 1, "class_a": 3, "class_b": 4}

    sorted_targets = sorted(num_outputs_per_target.items())
    target_names = tuple(t[0] for t in sorted_targets)
    target_sizes = tuple(t[1] for t in sorted_targets)
    total_outputs = sum(target_sizes)

    key = jax.random.PRNGKey(0)
    k_param, k_in = jax.random.split(key)

    params, meta = build_shared_residual_mlp_params(
        k_param, input_dimension, fc_task_dim, layers[0], total_outputs
    )
    x = jax.random.normal(k_in, (batch, input_dimension), jnp.float32)

    fwd = jax.jit(
        functools.partial(
            shared_residual_mlp_output_forward,
            meta=meta,
            target_names=target_names,
            target_sizes=target_sizes,
        )
    )
    out = fwd(x, params)
    jax.block_until_ready(out)

    # sanity: shapes match the split semantics
    for name, size in zip(target_names, target_sizes):
        assert out[name].shape == (batch, size), (name, out[name].shape)
    # sanity: no NaNs from padded lanes / padded batch rows
    for name in target_names:
        assert bool(jnp.all(jnp.isfinite(out[name])))

    print("KERNEL_OK")
</pallas_src>

<mosaic_0001>
module attributes {stable_mosaic.version = 11 : i64} {
  func.func @kernel(%arg0: i32, %arg1: memref<8x128xbf16, #tpu.memory_space<vmem>>, %arg2: memref<8x128xf32, #tpu.memory_space<vmem>>, %arg3: memref<8x128xf32, #tpu.memory_space<vmem>>, %arg4: memref<128x128xbf16, #tpu.memory_space<vmem>>, %arg5: memref<128x128xbf16, #tpu.memory_space<vmem>>, %arg6: memref<128x128xbf16, #tpu.memory_space<vmem>>, %arg7: memref<1x8x128xf32, #tpu.memory_space<vmem>>, %arg8: memref<1x128x128xbf16, #tpu.memory_space<vmem>>, %arg9: memref<1x128x128xbf16, #tpu.memory_space<vmem>>, %arg10: memref<8x128xf32, #tpu.memory_space<vmem>>, %arg11: memref<8x128xf32, #tpu.memory_space<vmem>>, %arg12: memref<128x128xbf16, #tpu.memory_space<vmem>>, %arg13: memref<128x128xbf16, #tpu.memory_space<vmem>>, %arg14: memref<128x128xbf16, #tpu.memory_space<vmem>>, %arg15: memref<8x128xf32, #tpu.memory_space<vmem>>) attributes {dimension_semantics = [#tpu.dimension_semantics<parallel>], iteration_bounds = array<i64: 1>, scalar_prefetch = 0 : i64, scratch_operands = 0 : i64, tpu.core_type = #tpu.core_type<tc>, window_params = [{transform_indices = @transform_0, window_bounds = array<i64: 8, 128>}, {pipeline_mode = #tpu.pipeline_mode<synchronous>, transform_indices = @transform_1, window_bounds = array<i64: 8, 128>}, {pipeline_mode = #tpu.pipeline_mode<synchronous>, transform_indices = @transform_2, window_bounds = array<i64: 8, 128>}, {pipeline_mode = #tpu.pipeline_mode<synchronous>, transform_indices = @transform_3, window_bounds = array<i64: 128, 128>}, {pipeline_mode = #tpu.pipeline_mode<synchronous>, transform_indices = @transform_4, window_bounds = array<i64: 128, 128>}, {pipeline_mode = #tpu.pipeline_mode<synchronous>, transform_indices = @transform_5, window_bounds = array<i64: 128, 128>}, {pipeline_mode = #tpu.pipeline_mode<synchronous>, transform_indices = @transform_6, window_bounds = array<i64: 1, 8, 128>}, {pipeline_mode = #tpu.pipeline_mode<synchronous>, transform_indices = @transform_7, window_bounds = array<i64: 1, 128, 128>}, {pipeline_mode = #tpu.pipeline_mode<synchronous>, transform_indices = @transform_8, window_bounds = array<i64: 1, 128, 128>}, {pipeline_mode = #tpu.pipeline_mode<synchronous>, transform_indices = @transform_9, window_bounds = array<i64: 8, 128>}, {pipeline_mode = #tpu.pipeline_mode<synchronous>, transform_indices = @transform_10, window_bounds = array<i64: 8, 128>}, {pipeline_mode = #tpu.pipeline_mode<synchronous>, transform_indices = @transform_11, window_bounds = array<i64: 128, 128>}, {pipeline_mode = #tpu.pipeline_mode<synchronous>, transform_indices = @transform_12, window_bounds = array<i64: 128, 128>}, {pipeline_mode = #tpu.pipeline_mode<synchronous>, transform_indices = @transform_13, window_bounds = array<i64: 128, 128>}, {transform_indices = @transform_14, window_bounds = array<i64: 8, 128>}]} {
    %c0 = arith.constant 0 : index
    %c0_0 = arith.constant 0 : index
    %0 = vector.load %arg1[%c0, %c0_0] : memref<8x128xbf16, #tpu.memory_space<vmem>>, vector<8x128xbf16>
    %1 = arith.extf %0 : vector<8x128xbf16> to vector<8x128xf32>
    %c0_1 = arith.constant 0 : index
    %c0_2 = arith.constant 0 : index
    %2 = vector.load %arg2[%c0_1, %c0_2] : memref<8x128xf32, #tpu.memory_space<vmem>>, vector<8x128xf32>
    %c0_3 = arith.constant 0 : index
    %c0_4 = arith.constant 0 : index
    %3 = vector.load %arg3[%c0_3, %c0_4] : memref<8x128xf32, #tpu.memory_space<vmem>>, vector<8x128xf32>
    %4 = vector.extract_strided_slice %2 {offsets = [0, 0], sizes = [1, 128], strides = [1, 1]} : vector<8x128xf32> to vector<1x128xf32>
    %5 = vector.extract_strided_slice %2 {offsets = [1, 0], sizes = [1, 128], strides = [1, 1]} : vector<8x128xf32> to vector<1x128xf32>
    %6 = vector.extract_strided_slice %3 {offsets = [0, 0], sizes = [1, 128], strides = [1, 1]} : vector<8x128xf32> to vector<1x128xf32>
    %7 = vector.extract_strided_slice %3 {offsets = [1, 0], sizes = [1, 128], strides = [1, 1]} : vector<8x128xf32> to vector<1x128xf32>
    %c0_5 = arith.constant 0 : index
    %c0_6 = arith.constant 0 : index
    %8 = vector.load %arg4[%c0_5, %c0_6] : memref<128x128xbf16, #tpu.memory_space<vmem>>, vector<128x128xbf16>
    %c0_7 = arith.constant 0 : index
    %c0_8 = arith.constant 0 : index
    %9 = vector.load %arg5[%c0_7, %c0_8] : memref<128x128xbf16, #tpu.memory_space<vmem>>, vector<128x128xbf16>
    %c0_9 = arith.constant 0 : index
    %c0_10 = arith.constant 0 : index
    %10 = vector.load %arg6[%c0_9, %c0_10] : memref<128x128xbf16, #tpu.memory_space<vmem>>, vector<128x128xbf16>
    %11 = vector.extract_strided_slice %3 {offsets = [2, 0], sizes = [1, 128], strides = [1, 1]} : vector<8x128xf32> to vector<1x128xf32>
    %cst = arith.constant dense<0.000000e+00> : vector<8xf32>
    %12 = vector.multi_reduction <add>, %1, %cst [1] : vector<8x128xf32> to vector<8xf32>
    %13 = vector.shape_cast %12 : vector<8xf32> to vector<8x1xf32>
    %14 = arith.mulf %1, %1 : vector<8x128xf32>
    %cst_11 = arith.constant dense<0.000000e+00> : vector<8xf32>
    %15 = vector.multi_reduction <add>, %14, %cst_11 [1] : vector<8x128xf32> to vector<8xf32>
    %16 = vector.shape_cast %15 : vector<8xf32> to vector<8x1xf32>
    %cst_12 = arith.constant 0.020833334 : f32
    %17 = vector.broadcast %cst_12 : f32 to vector<8x1xf32>
    %18 = arith.mulf %13, %17 : vector<8x1xf32>
    %cst_13 = arith.constant 0.020833334 : f32
    %19 = vector.broadcast %cst_13 : f32 to vector<8x1xf32>
    %20 = arith.mulf %16, %19 : vector<8x1xf32>
    %21 = arith.mulf %18, %18 : vector<8x1xf32>
    %22 = arith.subf %20, %21 : vector<8x1xf32>
    %23 = vector.broadcast %18 : vector<8x1xf32> to vector<8x128xf32>
    %24 = arith.subf %1, %23 : vector<8x128xf32>
    %cst_14 = arith.constant 9.99999974E-6 : f32
    %25 = vector.broadcast %cst_14 : f32 to vector<8x1xf32>
    %26 = arith.addf %22, %25 : vector<8x1xf32>
    %27 = math.rsqrt %26 : vector<8x1xf32>
    %28 = vector.broadcast %27 : vector<8x1xf32> to vector<8x128xf32>
    %29 = arith.mulf %24, %28 : vector<8x128xf32>
    %30 = vector.broadcast %4 : vector<1x128xf32> to vector<8x128xf32>
    %31 = arith.mulf %29, %30 : vector<8x128xf32>
    %32 = vector.broadcast %5 : vector<1x128xf32> to vector<8x128xf32>
    %33 = arith.addf %31, %32 : vector<8x128xf32>
    %34 = arith.truncf %33 : vector<8x128xf32> to vector<8x128xbf16>
    %cst_15 = arith.constant dense<0.000000e+00> : vector<8x128xf32>
    %35 = tpu.matmul %34, %8, %cst_15 {dimension_numbers = #tpu.dot_dimension_numbers<[1], [0], [0], [1], [0, 0, 1, 1], [], []>} : vector<8x128xbf16>, vector<128x128xbf16>, vector<8x128xf32> -> vector<8x128xf32>
    %36 = vector.broadcast %6 : vector<1x128xf32> to vector<8x128xf32>
    %37 = arith.addf %35, %36 : vector<8x128xf32>
    %cst_16 = arith.constant 0.000000e+00 : f32
    %38 = vector.broadcast %cst_16 : f32 to vector<8x128xf32>
    %39 = arith.subf %38, %37 : vector<8x128xf32>
    %40 = math.exp %39 : vector<8x128xf32>
    %cst_17 = arith.constant 1.000000e+00 : f32
    %41 = vector.broadcast %cst_17 : f32 to vector<8x128xf32>
    %42 = arith.addf %41, %40 : vector<8x128xf32>
    %43 = tpu.reciprocal %42 : vector<8x128xf32> -> vector<8x128xf32>
    %44 = arith.mulf %37, %43 : vector<8x128xf32>
    %45 = arith.truncf %44 : vector<8x128xf32> to vector<8x128xbf16>
    %cst_18 = arith.constant dense<0.000000e+00> : vector<8x128xf32>
    %46 = tpu.matmul %45, %9, %cst_18 {dimension_numbers = #tpu.dot_dimension_numbers<[1], [0], [0], [1], [0, 0, 1, 1], [], []>} : vector<8x128xbf16>, vector<128x128xbf16>, vector<8x128xf32> -> vector<8x128xf32>
    %47 = vector.broadcast %7 : vector<1x128xf32> to vector<8x128xf32>
    %48 = arith.addf %46, %47 : vector<8x128xf32>
    %49 = arith.truncf %1 : vector<8x128xf32> to vector<8x128xbf16>
    %cst_19 = arith.constant dense<0.000000e+00> : vector<8x128xf32>
    %50 = tpu.matmul %49, %10, %cst_19 {dimension_numbers = #tpu.dot_dimension_numbers<[1], [0], [0], [1], [0, 0, 1, 1], [], []>} : vector<8x128xbf16>, vector<128x128xbf16>, vector<8x128xf32> -> vector<8x128xf32>
    %51 = vector.broadcast %11 : vector<1x128xf32> to vector<8x128xf32>
    %52 = arith.addf %50, %51 : vector<8x128xf32>
    %53 = arith.addf %48, %52 : vector<8x128xf32>
    %c0_i32 = arith.constant 0 : i32
    %54 = arith.index_cast %c0_i32 : i32 to index
    %c0_20 = arith.constant 0 : index
    %c0_21 = arith.constant 0 : index
    %55 = vector.load %arg7[%54, %c0_20, %c0_21] : memref<1x8x128xf32, #tpu.memory_space<vmem>>, vector<1x8x128xf32>
    %56 = vector.shape_cast %55 : vector<1x8x128xf32> to vector<8x128xf32>
    %57 = vector.extract_strided_slice %56 {offsets = [0, 0], sizes = [1, 128], strides = [1, 1]} : vector<8x128xf32> to vector<1x128xf32>
    %58 = vector.extract_strided_slice %56 {offsets = [1, 0], sizes = [1, 128], strides = [1, 1]} : vector<8x128xf32> to vector<1x128xf32>
    %59 = vector.extract_strided_slice %56 {offsets = [2, 0], sizes = [1, 128], strides = [1, 1]} : vector<8x128xf32> to vector<1x128xf32>
    %60 = vector.extract_strided_slice %56 {offsets = [3, 0], sizes = [1, 128], strides = [1, 1]} : vector<8x128xf32> to vector<1x128xf32>
    %61 = arith.index_cast %c0_i32 : i32 to index
    %c0_22 = arith.constant 0 : index
    %c0_23 = arith.constant 0 : index
    %62 = vector.load %arg8[%61, %c0_22, %c0_23] : memref<1x128x128xbf16, #tpu.memory_space<vmem>>, vector<1x128x128xbf16>
    %63 = vector.shape_cast %62 : vector<1x128x128xbf16> to vector<128x128xbf16>
    %64 = arith.index_cast %c0_i32 : i32 to index
    %c0_24 = arith.constant 0 : index
    %c0_25 = arith.constant 0 : index
    %65 = vector.load %arg9[%64, %c0_24, %c0_25] : memref<1x128x128xbf16, #tpu.memory_space<vmem>>, vector<1x128x128xbf16>
    %66 = vector.shape_cast %65 : vector<1x128x128xbf16> to vector<128x128xbf16>
    %cst_26 = arith.constant dense<0.000000e+00> : vector<8xf32>
    %67 = vector.multi_reduction <add>, %53, %cst_26 [1] : vector<8x128xf32> to vector<8xf32>
    %68 = vector.shape_cast %67 : vector<8xf32> to vector<8x1xf32>
    %69 = arith.mulf %53, %53 : vector<8x128xf32>
    %cst_27 = arith.constant dense<0.000000e+00> : vector<8xf32>
    %70 = vector.multi_reduction <add>, %69, %cst_27 [1] : vector<8x128xf32> to vector<8xf32>
    %71 = vector.shape_cast %70 : vector<8xf32> to vector<8x1xf32>
    %cst_28 = arith.constant 3.125000e-02 : f32
    %72 = vector.broadcast %cst_28 : f32 to vector<8x1xf32>
    %73 = arith.mulf %68, %72 : vector<8x1xf32>
    %cst_29 = arith.constant 3.125000e-02 : f32
    %74 = vector.broadcast %cst_29 : f32 to vector<8x1xf32>
    %75 = arith.mulf %71, %74 : vector<8x1xf32>
    %76 = arith.mulf %73, %73 : vector<8x1xf32>
    %77 = arith.subf %75, %76 : vector<8x1xf32>
    %78 = vector.broadcast %73 : vector<8x1xf32> to vector<8x128xf32>
    %79 = arith.subf %53, %78 : vector<8x128xf32>
    %cst_30 = arith.constant 9.99999974E-6 : f32
    %80 = vector.broadcast %cst_30 : f32 to vector<8x1xf32>
    %81 = arith.addf %77, %80 : vector<8x1xf32>
    %82 = math.rsqrt %81 : vector<8x1xf32>
    %83 = vector.broadcast %82 : vector<8x1xf32> to vector<8x128xf32>
    %84 = arith.mulf %79, %83 : vector<8x128xf32>
    %85 = vector.broadcast %57 : vector<1x128xf32> to vector<8x128xf32>
    %86 = arith.mulf %84, %85 : vector<8x128xf32>
    %87 = vector.broadcast %58 : vector<1x128xf32> to vector<8x128xf32>
    %88 = arith.addf %86, %87 : vector<8x128xf32>
    %89 = arith.truncf %88 : vector<8x128xf32> to vector<8x128xbf16>
    %cst_31 = arith.constant dense<0.000000e+00> : vector<8x128xf32>
    %90 = tpu.matmul %89, %63, %cst_31 {dimension_numbers = #tpu.dot_dimension_numbers<[1], [0], [0], [1], [0, 0, 1, 1], [], []>} : vector<8x128xbf16>, vector<128x128xbf16>, vector<8x128xf32> -> vector<8x128xf32>
    %91 = vector.broadcast %59 : vector<1x128xf32> to vector<8x128xf32>
    %92 = arith.addf %90, %91 : vector<8x128xf32>
    %cst_32 = arith.constant 0.000000e+00 : f32
    %93 = vector.broadcast %cst_32 : f32 to vector<8x128xf32>
    %94 = arith.subf %93, %92 : vector<8x128xf32>
    %95 = math.exp %94 : vector<8x128xf32>
    %cst_33 = arith.constant 1.000000e+00 : f32
    %96 = vector.broadcast %cst_33 : f32 to vector<8x128xf32>
    %97 = arith.addf %96, %95 : vector<8x128xf32>
    %98 = tpu.reciprocal %97 : vector<8x128xf32> -> vector<8x128xf32>
    %99 = arith.mulf %92, %98 : vector<8x128xf32>
    %100 = arith.truncf %99 : vector<8x128xf32> to vector<8x128xbf16>
    %cst_34 = arith.constant dense<0.000000e+00> : vector<8x128xf32>
    %101 = tpu.matmul %100, %66, %cst_34 {dimension_numbers = #tpu.dot_dimension_numbers<[1], [0], [0], [1], [0, 0, 1, 1], [], []>} : vector<8x128xbf16>, vector<128x128xbf16>, vector<8x128xf32> -> vector<8x128xf32>
    %102 = vector.broadcast %60 : vector<1x128xf32> to vector<8x128xf32>
    %103 = arith.addf %101, %102 : vector<8x128xf32>
    %104 = arith.addf %103, %53 : vector<8x128xf32>
    %c1_i32 = arith.constant 1 : i32
    %c0_35 = arith.constant 0 : index
    %c0_36 = arith.constant 0 : index
    %105 = vector.load %arg10[%c0_35, %c0_36] : memref<8x128xf32, #tpu.memory_space<vmem>>, vector<8x128xf32>
    %c0_37 = arith.constant 0 : index
    %c0_38 = arith.constant 0 : index
    %106 = vector.load %arg11[%c0_37, %c0_38] : memref<8x128xf32, #tpu.memory_space<vmem>>, vector<8x128xf32>
    %107 = vector.extract_strided_slice %105 {offsets = [0, 0], sizes = [1, 128], strides = [1, 1]} : vector<8x128xf32> to vector<1x128xf32>
    %108 = vector.extract_strided_slice %105 {offsets = [1, 0], sizes = [1, 128], strides = [1, 1]} : vector<8x128xf32> to vector<1x128xf32>
    %109 = vector.extract_strided_slice %106 {offsets = [0, 0], sizes = [1, 128], strides = [1, 1]} : vector<8x128xf32> to vector<1x128xf32>
    %110 = vector.extract_strided_slice %106 {offsets = [1, 0], sizes = [1, 128], strides = [1, 1]} : vector<8x128xf32> to vector<1x128xf32>
    %c0_39 = arith.constant 0 : index
    %c0_40 = arith.constant 0 : index
    %111 = vector.load %arg12[%c0_39, %c0_40] : memref<128x128xbf16, #tpu.memory_space<vmem>>, vector<128x128xbf16>
    %c0_41 = arith.constant 0 : index
    %c0_42 = arith.constant 0 : index
    %112 = vector.load %arg13[%c0_41, %c0_42] : memref<128x128xbf16, #tpu.memory_space<vmem>>, vector<128x128xbf16>
    %c0_43 = arith.constant 0 : index
    %c0_44 = arith.constant 0 : index
    %113 = vector.load %arg14[%c0_43, %c0_44] : memref<128x128xbf16, #tpu.memory_space<vmem>>, vector<128x128xbf16>
    %114 = vector.extract_strided_slice %106 {offsets = [2, 0], sizes = [1, 128], strides = [1, 1]} : vector<8x128xf32> to vector<1x128xf32>
    %cst_45 = arith.constant dense<0.000000e+00> : vector<8xf32>
    %115 = vector.multi_reduction <add>, %104, %cst_45 [1] : vector<8x128xf32> to vector<8xf32>
    %116 = vector.shape_cast %115 : vector<8xf32> to vector<8x1xf32>
    %117 = arith.mulf %104, %104 : vector<8x128xf32>
    %cst_46 = arith.constant dense<0.000000e+00> : vector<8xf32>
    %118 = vector.multi_reduction <add>, %117, %cst_46 [1] : vector<8x128xf32> to vector<8xf32>
    %119 = vector.shape_cast %118 : vector<8xf32> to vector<8x1xf32>
    %cst_47 = arith.constant 3.125000e-02 : f32
    %120 = vector.broadcast %cst_47 : f32 to vector<8x1xf32>
    %121 = arith.mulf %116, %120 : vector<8x1xf32>
    %cst_48 = arith.constant 3.125000e-02 : f32
    %122 = vector.broadcast %cst_48 : f32 to vector<8x1xf32>
    %123 = arith.mulf %119, %122 : vector<8x1xf32>
    %124 = arith.mulf %121, %121 : vector<8x1xf32>
    %125 = arith.subf %123, %124 : vector<8x1xf32>
    %126 = vector.broadcast %121 : vector<8x1xf32> to vector<8x128xf32>
    %127 = arith.subf %104, %126 : vector<8x128xf32>
    %cst_49 = arith.constant 9.99999974E-6 : f32
    %128 = vector.broadcast %cst_49 : f32 to vector<8x1xf32>
    %129 = arith.addf %125, %128 : vector<8x1xf32>
    %130 = math.rsqrt %129 : vector<8x1xf32>
    %131 = vector.broadcast %130 : vector<8x1xf32> to vector<8x128xf32>
    %132 = arith.mulf %127, %131 : vector<8x128xf32>
    %133 = vector.broadcast %107 : vector<1x128xf32> to vector<8x128xf32>
    %134 = arith.mulf %132, %133 : vector<8x128xf32>
    %135 = vector.broadcast %108 : vector<1x128xf32> to vector<8x128xf32>
    %136 = arith.addf %134, %135 : vector<8x128xf32>
    %137 = arith.truncf %136 : vector<8x128xf32> to vector<8x128xbf16>
    %cst_50 = arith.constant dense<0.000000e+00> : vector<8x128xf32>
    %138 = tpu.matmul %137, %111, %cst_50 {dimension_numbers = #tpu.dot_dimension_numbers<[1], [0], [0], [1], [0, 0, 1, 1], [], []>} : vector<8x128xbf16>, vector<128x128xbf16>, vector<8x128xf32> -> vector<8x128xf32>
    %139 = vector.broadcast %109 : vector<1x128xf32> to vector<8x128xf32>
    %140 = arith.addf %138, %139 : vector<8x128xf32>
    %cst_51 = arith.constant 0.000000e+00 : f32
    %141 = vector.broadcast %cst_51 : f32 to vector<8x128xf32>
    %142 = arith.subf %141, %140 : vector<8x128xf32>
    %143 = math.exp %142 : vector<8x128xf32>
    %cst_52 = arith.constant 1.000000e+00 : f32
    %144 = vector.broadcast %cst_52 : f32 to vector<8x128xf32>
    %145 = arith.addf %144, %143 : vector<8x128xf32>
    %146 = tpu.reciprocal %145 : vector<8x128xf32> -> vector<8x128xf32>
    %147 = arith.mulf %140, %146 : vector<8x128xf32>
    %148 = arith.truncf %147 : vector<8x128xf32> to vector<8x128xbf16>
    %cst_53 = arith.constant dense<0.000000e+00> : vector<8x128xf32>
    %149 = tpu.matmul %148, %112, %cst_53 {dimension_numbers = #tpu.dot_dimension_numbers<[1], [0], [0], [1], [0, 0, 1, 1], [], []>} : vector<8x128xbf16>, vector<128x128xbf16>, vector<8x128xf32> -> vector<8x128xf32>
    %150 = vector.broadcast %110 : vector<1x128xf32> to vector<8x128xf32>
    %151 = arith.addf %149, %150 : vector<8x128xf32>
    %152 = arith.truncf %104 : vector<8x128xf32> to vector<8x128xbf16>
    %cst_54 = arith.constant dense<0.000000e+00> : vector<8x128xf32>
    %153 = tpu.matmul %152, %113, %cst_54 {dimension_numbers = #tpu.dot_dimension_numbers<[1], [0], [0], [1], [0, 0, 1, 1], [], []>} : vector<8x128xbf16>, vector<128x128xbf16>, vector<8x128xf32> -> vector<8x128xf32>
    %154 = vector.broadcast %114 : vector<1x128xf32> to vector<8x128xf32>
    %155 = arith.addf %153, %154 : vector<8x128xf32>
    %156 = arith.addf %151, %155 : vector<8x128xf32>
    %c0_55 = arith.constant 0 : index
    %c0_56 = arith.constant 0 : index
    %157 = vector.load %arg15[%c0_55, %c0_56] : memref<8x128xf32, #tpu.memory_space<vmem>>, vector<8x128xf32>
    tpu.vector_store %arg15[%c0_55, %c0_56], %156 {strides = array<i32>} : memref<8x128xf32, #tpu.memory_space<vmem>>, vector<8x128xf32>,
    return
  }
  func.func @transform_0(%arg0: i32) -> (i32, i32) {
    %c0_i32 = arith.constant 0 : i32
    %c0_i32_0 = arith.constant 0 : i32
    return %arg0, %c0_i32 : i32, i32
  }
  func.func @transform_1(%arg0: i32) -> (i32, i32) {
    %c0_i32 = arith.constant 0 : i32
    %c0_i32_0 = arith.constant 0 : i32
    %c0_i32_1 = arith.constant 0 : i32
    return %c0_i32, %c0_i32_0 : i32, i32
  }
  func.func @transform_2(%arg0: i32) -> (i32, i32) {
    %c0_i32 = arith.constant 0 : i32
    %c0_i32_0 = arith.constant 0 : i32
    %c0_i32_1 = arith.constant 0 : i32
    return %c0_i32, %c0_i32_0 : i32, i32
  }
  func.func @transform_3(%arg0: i32) -> (i32, i32) {
    %c0_i32 = arith.constant 0 : i32
    %c0_i32_0 = arith.constant 0 : i32
    %c0_i32_1 = arith.constant 0 : i32
    return %c0_i32, %c0_i32_0 : i32, i32
  }
  func.func @transform_4(%arg0: i32) -> (i32, i32) {
    %c0_i32 = arith.constant 0 : i32
    %c0_i32_0 = arith.constant 0 : i32
    %c0_i32_1 = arith.constant 0 : i32
    return %c0_i32, %c0_i32_0 : i32, i32
  }
  func.func @transform_5(%arg0: i32) -> (i32, i32) {
    %c0_i32 = arith.constant 0 : i32
    %c0_i32_0 = arith.constant 0 : i32
    %c0_i32_1 = arith.constant 0 : i32
    return %c0_i32, %c0_i32_0 : i32, i32
  }
  func.func @transform_6(%arg0: i32) -> (i32, i32, i32) {
    %c0_i32 = arith.constant 0 : i32
    %c0_i32_0 = arith.constant 0 : i32
    %c0_i32_1 = arith.constant 0 : i32
    %c0_i32_2 = arith.constant 0 : i32
    return %c0_i32, %c0_i32_0, %c0_i32_1 : i32, i32, i32
  }
  func.func @transform_7(%arg0: i32) -> (i32, i32, i32) {
    %c0_i32 = arith.constant 0 : i32
    %c0_i32_0 = arith.constant 0 : i32
    %c0_i32_1 = arith.constant 0 : i32
    %c0_i32_2 = arith.constant 0 : i32
    return %c0_i32, %c0_i32_0, %c0_i32_1 : i32, i32, i32
  }
  func.func @transform_8(%arg0: i32) -> (i32, i32, i32) {
    %c0_i32 = arith.constant 0 : i32
    %c0_i32_0 = arith.constant 0 : i32
    %c0_i32_1 = arith.constant 0 : i32
    %c0_i32_2 = arith.constant 0 : i32
    return %c0_i32, %c0_i32_0, %c0_i32_1 : i32, i32, i32
  }
  func.func @transform_9(%arg0: i32) -> (i32, i32) {
    %c0_i32 = arith.constant 0 : i32
    %c0_i32_0 = arith.constant 0 : i32
    %c0_i32_1 = arith.constant 0 : i32
    return %c0_i32, %c0_i32_0 : i32, i32
  }
  func.func @transform_10(%arg0: i32) -> (i32, i32) {
    %c0_i32 = arith.constant 0 : i32
    %c0_i32_0 = arith.constant 0 : i32
    %c0_i32_1 = arith.constant 0 : i32
    return %c0_i32, %c0_i32_0 : i32, i32
  }
  func.func @transform_11(%arg0: i32) -> (i32, i32) {
    %c0_i32 = arith.constant 0 : i32
    %c0_i32_0 = arith.constant 0 : i32
    %c0_i32_1 = arith.constant 0 : i32
    return %c0_i32, %c0_i32_0 : i32, i32
  }
  func.func @transform_12(%arg0: i32) -> (i32, i32) {
    %c0_i32 = arith.constant 0 : i32
    %c0_i32_0 = arith.constant 0 : i32
    %c0_i32_1 = arith.constant 0 : i32
    return %c0_i32, %c0_i32_0 : i32, i32
  }
  func.func @transform_13(%arg0: i32) -> (i32, i32) {
    %c0_i32 = arith.constant 0 : i32
    %c0_i32_0 = arith.constant 0 : i32
    %c0_i32_1 = arith.constant 0 : i32
    return %c0_i32, %c0_i32_0 : i32, i32
  }
  func.func @transform_14(%arg0: i32) -> (i32, i32) {
    %c0_i32 = arith.constant 0 : i32
    %c0_i32_0 = arith.constant 0 : i32
    return %arg0, %c0_i32 : i32, i32
  }
}

</mosaic_0001>

<llo_original>
// kernel: shared_residual_mlp_output_forward.1
$region0: #{shared_residual_mlp_output_forward.1}
  #allocation0 [shape = 'u32[]', space=smem, size = 0x4, offset = 0x4, fixed_abs, tag = 'smem constant byte address 0x4 - core index']
  #allocation1 [shape = 'u32[72,128]{1,0:T(1,128)}', space=vmem, size = 0x9000, scoped, tag = 'internal scratch']
  %s0 = inlined_call_operand.vmem [shape: bf16[8,128], index: 0, kind: input, shape index: {}]
  %s1 = inlined_call_operand.vmem [shape: f32[8,128], index: 1, kind: input, shape index: {}]
  %s2 = inlined_call_operand.vmem [shape: f32[8,128], index: 2, kind: input, shape index: {}]
  %s3 = inlined_call_operand.hbm [shape: bf16[128,128], index: 3, kind: input, shape index: {}]
  %s4 = inlined_call_operand.hbm [shape: bf16[128,128], index: 4, kind: input, shape index: {}]
  %s5 = inlined_call_operand.hbm [shape: bf16[128,128], index: 5, kind: input, shape index: {}]
  %s6 = inlined_call_operand.vmem [shape: f32[1,8,128], index: 6, kind: input, shape index: {}]
  %s7 = inlined_call_operand.hbm [shape: bf16[1,128,128], index: 7, kind: input, shape index: {}]
  %s8 = inlined_call_operand.hbm [shape: bf16[1,128,128], index: 8, kind: input, shape index: {}]
  %s9 = inlined_call_operand.hbm [shape: f32[8,128], index: 9, kind: input, shape index: {}]
  %s10 = inlined_call_operand.hbm [shape: f32[8,128], index: 10, kind: input, shape index: {}]
  %s11 = inlined_call_operand.hbm [shape: bf16[128,128], index: 11, kind: input, shape index: {}]
  %s12 = inlined_call_operand.hbm [shape: bf16[128,128], index: 12, kind: input, shape index: {}]
  %s13 = inlined_call_operand.hbm [shape: bf16[128,128], index: 13, kind: input, shape index: {}]
  %s14 = inlined_call_operand.vmem [shape: f32[8,128], index: 14, kind: output, shape index: {}]
  %s15 = sld [smem:[#allocation0]]
  $region106: #{shared_residual_mlp_output_forward.1} parent=0
    _
  %s17 = ssub.s32 1, %s15
  %s18 = scalar_select 0, %s17, %s15
  $region1: #{shared_residual_mlp_output_forward.1} parent=0
    #allocation2 [shape = 'u8[32768]{0}', space=vmem, size = 0x8000, scoped, tag = 'input window, operand 3, single buffered']
    #allocation3 [shape = 's32[1]{0}', space=sflag, size = 0x4, scoped, tag = 'scoped memory for shared_residual_mlp_output_forward.1']
    #allocation4 [shape = 'u8[32768]{0}', space=vmem, size = 0x8000, scoped, tag = 'input window, operand 4, single buffered']
    #allocation5 [shape = 's32[1]{0}', space=sflag, size = 0x4, scoped, tag = 'scoped memory for shared_residual_mlp_output_forward.1']
    #allocation6 [shape = 'u8[32768]{0}', space=vmem, size = 0x8000, scoped, tag = 'input window, operand 5, single buffered']
    #allocation7 [shape = 'u8[32768]{0}', space=vmem, size = 0x8000, scoped, tag = 'input window, operand 7, single buffered']
    #allocation8 [shape = 's32[1]{0}', space=sflag, size = 0x4, scoped, tag = 'scoped memory for shared_residual_mlp_output_forward.1']
    #allocation9 [shape = 'u8[32768]{0}', space=vmem, size = 0x8000, scoped, tag = 'input window, operand 8, single buffered']
    #allocation10 [shape = 'u8[4096]{0}', space=vmem, size = 0x1000, scoped, tag = 'input window, operand 9, single buffered']
    #allocation11 [shape = 's32[1]{0}', space=sflag, size = 0x4, scoped, tag = 'scoped memory for shared_residual_mlp_output_forward.1']
    #allocation12 [shape = 'u8[4096]{0}', space=vmem, size = 0x1000, scoped, tag = 'input window, operand 10, single buffered']
    #allocation13 [shape = 'u8[32768]{0}', space=vmem, size = 0x8000, scoped, tag = 'input window, operand 11, single buffered']
    #allocation14 [shape = 's32[1]{0}', space=sflag, size = 0x4, scoped, tag = 'scoped memory for shared_residual_mlp_output_forward.1']
    #allocation15 [shape = 'u8[32768]{0}', space=vmem, size = 0x8000, scoped, tag = 'input window, operand 12, single buffered']
    #allocation16 [shape = 'u8[32768]{0}', space=vmem, size = 0x8000, scoped, tag = 'input window, operand 13, single buffered']
    #allocation17 [shape = 's32[1]{0}', space=sflag, size = 0x4, scoped, tag = 'scoped memory for shared_residual_mlp_output_forward.1']
    %19 = vsyncpa [#allocation3], 0
    %20 = vsyncpa [#allocation5], 0
    %21 = vsyncpa [#allocation8], 0
    %22 = vsyncpa [#allocation11], 0
    %23 = vsyncpa [#allocation14], 0
    %24 = vsyncpa [#allocation17], 0
    // Predicated region
    $region2: #{shared_residual_mlp_output_forward.1} parent=1 // pred_check
      _
    $region3: #{shared_residual_mlp_output_forward.1} parent=1 // pred_check_branch
      %26 = sbr.rel (0) target = $region5
    $region4: #{shared_residual_mlp_output_forward.1} parent=1 // pred_region
      _
    $region5: #{shared_residual_mlp_output_forward.1} parent=1 // pred_fallthru
      _
    // Predicated region
    $region6: #{shared_residual_mlp_output_forward.1} parent=1 // pred_check
      _
    $region7: #{shared_residual_mlp_output_forward.1} parent=1 // pred_check_branch
      %28 = sbr.rel (0) target = $region9
    $region8: #{shared_residual_mlp_output_forward.1} parent=1 // pred_region
      _
    $region9: #{shared_residual_mlp_output_forward.1} parent=1 // pred_fallthru
      _
    // Predicated region
    $region10: #{shared_residual_mlp_output_forward.1} parent=1 // pred_check
      _
    $region11: #{shared_residual_mlp_output_forward.1} parent=1 // pred_check_branch
      %30 = sbr.rel (0) target = $region13
    $region12: #{shared_residual_mlp_output_forward.1} parent=1 // pred_region
      _
    $region13: #{shared_residual_mlp_output_forward.1} parent=1 // pred_fallthru
      _
    // Predicated region
    $region14: #{shared_residual_mlp_output_forward.1} parent=1 // pred_check
      _
    $region15: #{shared_residual_mlp_output_forward.1} parent=1 // pred_check_branch
      %32 = sbr.rel (0) target = $region17
    $region16: #{shared_residual_mlp_output_forward.1} parent=1 // pred_region
      %34 = vsyncadd [#allocation3], 0
      %s35 = sshll.u32 %s3, 4
      %s36 = int_to_ptr.hbm [resolvable:$true] %s35
      %s37 = sshll.u32 [#allocation2], 4
      %s38 = int_to_ptr.vmem [resolvable:$true] %s37
      %43 = dma.hbm_to_vmem [thread:$0]  %s36, 1024, %s38, [#allocation3], 64, 64, 4
    $region17: #{shared_residual_mlp_output_forward.1} parent=1 // pred_fallthru
      _
    // Predicated region
    $region18: #{shared_residual_mlp_output_forward.1} parent=1 // pred_check
      _
    $region19: #{shared_residual_mlp_output_forward.1} parent=1 // pred_check_branch
      %45 = sbr.rel (0) target = $region21
    $region20: #{shared_residual_mlp_output_forward.1} parent=1 // pred_region
      %47 = vsyncadd [#allocation5], 0
      %s48 = sshll.u32 %s4, 4
      %s49 = int_to_ptr.hbm [resolvable:$true] %s48
      %s50 = sshll.u32 [#allocation4], 4
      %s51 = int_to_ptr.vmem [resolvable:$true] %s50
      %56 = dma.hbm_to_vmem [thread:$0]  %s49, 1024, %s51, [#allocation5], 64, 64, 4
    $region21: #{shared_residual_mlp_output_forward.1} parent=1 // pred_fallthru
      _
    // Predicated region
    $region22: #{shared_residual_mlp_output_forward.1} parent=1 // pred_check
      _
    $region23: #{shared_residual_mlp_output_forward.1} parent=1 // pred_check_branch
      %58 = sbr.rel (0) target = $region25
    $region24: #{shared_residual_mlp_output_forward.1} parent=1 // pred_region
      %60 = vsyncadd [#allocation5], 0
      %s61 = sshll.u32 %s5, 4
      %s62 = int_to_ptr.hbm [resolvable:$true] %s61
      %s63 = sshll.u32 [#allocation6], 4
      %s64 = int_to_ptr.vmem [resolvable:$true] %s63
      %69 = dma.hbm_to_vmem [thread:$0]  %s62, 1024, %s64, [#allocation5], 64, 64, 4
    $region25: #{shared_residual_mlp_output_forward.1} parent=1 // pred_fallthru
      _
    // Predicated region
    $region26: #{shared_residual_mlp_output_forward.1} parent=1 // pred_check
      _
    $region27: #{shared_residual_mlp_output_forward.1} parent=1 // pred_check_branch
      %71 = sbr.rel (0) target = $region29
    $region28: #{shared_residual_mlp_output_forward.1} parent=1 // pred_region
      _
    $region29: #{shared_residual_mlp_output_forward.1} parent=1 // pred_fallthru
      _
    // Predicated region
    $region30: #{shared_residual_mlp_output_forward.1} parent=1 // pred_check
      _
    $region31: #{shared_residual_mlp_output_forward.1} parent=1 // pred_check_branch
      %73 = sbr.rel (0) target = $region33
    $region32: #{shared_residual_mlp_output_forward.1} parent=1 // pred_region
      %75 = vsyncadd [#allocation8], 0
      %s76 = sshll.u32 %s7, 4
      %s77 = int_to_ptr.hbm [resolvable:$true] %s76
      %s78 = sshll.u32 [#allocation7], 4
      %s79 = int_to_ptr.vmem [resolvable:$true] %s78
      %84 = dma.hbm_to_vmem [thread:$0]  %s77, 1024, %s79, [#allocation8], 64, 64, 4
    $region33: #{shared_residual_mlp_output_forward.1} parent=1 // pred_fallthru
      _
    // Predicated region
    $region34: #{shared_residual_mlp_output_forward.1} parent=1 // pred_check
      _
    $region35: #{shared_residual_mlp_output_forward.1} parent=1 // pred_check_branch
      %86 = sbr.rel (0) target = $region37
    $region36: #{shared_residual_mlp_output_forward.1} parent=1 // pred_region
      %88 = vsyncadd [#allocation8], 0
      %s89 = sshll.u32 %s8, 4
      %s90 = int_to_ptr.hbm [resolvable:$true] %s89
      %s91 = sshll.u32 [#allocation9], 4
      %s92 = int_to_ptr.vmem [resolvable:$true] %s91
      %97 = dma.hbm_to_vmem [thread:$0]  %s90, 1024, %s92, [#allocation8], 64, 64, 4
    $region37: #{shared_residual_mlp_output_forward.1} parent=1 // pred_fallthru
      _
    // Predicated region
    $region38: #{shared_residual_mlp_output_forward.1} parent=1 // pred_check
      _
    $region39: #{shared_residual_mlp_output_forward.1} parent=1 // pred_check_branch
      %99 = sbr.rel (0) target = $region41
    $region40: #{shared_residual_mlp_output_forward.1} parent=1 // pred_region
      %101 = vsyncadd [#allocation11], 0
      %s103 = sshll.u32 %s9, 4
      %s104 = int_to_ptr.hbm [resolvable:$true] %s103
      %s105 = sshll.u32 [#allocation10], 4
      %s106 = int_to_ptr.vmem [resolvable:$true] %s105
      %108 = dma.hbm_to_vmem [thread:$0]  %s104, 128, %s106, [#allocation11]
    $region41: #{shared_residual_mlp_output_forward.1} parent=1 // pred_fallthru
      _
    // Predicated region
    $region42: #{shared_residual_mlp_output_forward.1} parent=1 // pred_check
      _
    $region43: #{shared_residual_mlp_output_forward.1} parent=1 // pred_check_branch
      %110 = sbr.rel (0) target = $region45
    $region44: #{shared_residual_mlp_output_forward.1} parent=1 // pred_region
      %112 = vsyncadd [#allocation11], 0
      %s114 = sshll.u32 %s10, 4
      %s115 = int_to_ptr.hbm [resolvable:$true] %s114
      %s116 = sshll.u32 [#allocation12], 4
      %s117 = int_to_ptr.vmem [resolvable:$true] %s116
      %119 = dma.hbm_to_vmem [thread:$0]  %s115, 128, %s117, [#allocation11]
    $region45: #{shared_residual_mlp_output_forward.1} parent=1 // pred_fallthru
      _
    // Predicated region
    $region46: #{shared_residual_mlp_output_forward.1} parent=1 // pred_check
      _
    $region47: #{shared_residual_mlp_output_forward.1} parent=1 // pred_check_branch
      %121 = sbr.rel (0) target = $region49
    $region48: #{shared_residual_mlp_output_forward.1} parent=1 // pred_region
      %123 = vsyncadd [#allocation14], 0
      %s124 = sshll.u32 %s11, 4
      %s125 = int_to_ptr.hbm [resolvable:$true] %s124
      %s126 = sshll.u32 [#allocation13], 4
      %s127 = int_to_ptr.vmem [resolvable:$true] %s126
      %132 = dma.hbm_to_vmem [thread:$0]  %s125, 1024, %s127, [#allocation14], 64, 64, 4
    $region49: #{shared_residual_mlp_output_forward.1} parent=1 // pred_fallthru
      _
    // Predicated region
    $region50: #{shared_residual_mlp_output_forward.1} parent=1 // pred_check
      _
    $region51: #{shared_residual_mlp_output_forward.1} parent=1 // pred_check_branch
      %134 = sbr.rel (0) target = $region53
    $region52: #{shared_residual_mlp_output_forward.1} parent=1 // pred_region
      %136 = vsyncadd [#allocation14], 0
      %s137 = sshll.u32 %s12, 4
      %s138 = int_to_ptr.hbm [resolvable:$true] %s137
      %s139 = sshll.u32 [#allocation15], 4
      %s140 = int_to_ptr.vmem [resolvable:$true] %s139
      %145 = dma.hbm_to_vmem [thread:$0]  %s138, 1024, %s140, [#allocation14], 64, 64, 4
    $region53: #{shared_residual_mlp_output_forward.1} parent=1 // pred_fallthru
      _
    // Predicated region
    $region54: #{shared_residual_mlp_output_forward.1} parent=1 // pred_check
      _
    $region55: #{shared_residual_mlp_output_forward.1} parent=1 // pred_check_branch
      %147 = sbr.rel (0) target = $region57
    $region56: #{shared_residual_mlp_output_forward.1} parent=1 // pred_region
      %149 = vsyncadd [#allocation17], 0
      %s150 = sshll.u32 %s13, 4
      %s151 = int_to_ptr.hbm [resolvable:$true] %s150
      %s152 = sshll.u32 [#allocation16], 4
      %s153 = int_to_ptr.vmem [resolvable:$true] %s152
      %158 = dma.hbm_to_vmem [thread:$0]  %s151, 1024, %s153, [#allocation17], 64, 64, 4
    $region57: #{shared_residual_mlp_output_forward.1} parent=1 // pred_fallthru
      _
    // Predicated region
    $region58: #{shared_residual_mlp_output_forward.1} parent=1 // pred_check
      _
    $region59: #{shared_residual_mlp_output_forward.1} parent=1 // pred_check_branch
      %160 = sbr.rel (0) target = $region61
    $region60: #{shared_residual_mlp_output_forward.1} parent=1 // pred_region
      %162 = dma.done [#allocation3], 1024
    $region61: #{shared_residual_mlp_output_forward.1} parent=1 // pred_fallthru
      _
    // Predicated region
    $region62: #{shared_residual_mlp_output_forward.1} parent=1 // pred_check
      _
    $region63: #{shared_residual_mlp_output_forward.1} parent=1 // pred_check_branch
      %164 = sbr.rel (0) target = $region65
    $region64: #{shared_residual_mlp_output_forward.1} parent=1 // pred_region
      %166 = dma.done [#allocation5], 1024
    $region65: #{shared_residual_mlp_output_forward.1} parent=1 // pred_fallthru
      _
    // Predicated region
    $region66: #{shared_residual_mlp_output_forward.1} parent=1 // pred_check
      _
    $region67: #{shared_residual_mlp_output_forward.1} parent=1 // pred_check_branch
      %168 = sbr.rel (0) target = $region69
    $region68: #{shared_residual_mlp_output_forward.1} parent=1 // pred_region
      %170 = dma.done [#allocation5], 1024
    $region69: #{shared_residual_mlp_output_forward.1} parent=1 // pred_fallthru
      _
    // Predicated region
    $region70: #{shared_residual_mlp_output_forward.1} parent=1 // pred_check
      _
    $region71: #{shared_residual_mlp_output_forward.1} parent=1 // pred_check_branch
      %172 = sbr.rel (0) target = $region73
    $region72: #{shared_residual_mlp_output_forward.1} parent=1 // pred_region
      %174 = dma.done [#allocation8], 1024
    $region73: #{shared_residual_mlp_output_forward.1} parent=1 // pred_fallthru
      _
    // Predicated region
    $region74: #{shared_residual_mlp_output_forward.1} parent=1 // pred_check
      _
    $region75: #{shared_residual_mlp_output_forward.1} parent=1 // pred_check_branch
      %176 = sbr.rel (0) target = $region77
    $region76: #{shared_residual_mlp_output_forward.1} parent=1 // pred_region
      %178 = dma.done [#allocation8], 1024
    $region77: #{shared_residual_mlp_output_forward.1} parent=1 // pred_fallthru
      _
    // Predicated region
    $region78: #{shared_residual_mlp_output_forward.1} parent=1 // pred_check
      _
    $region79: #{shared_residual_mlp_output_forward.1} parent=1 // pred_check_branch
      %180 = sbr.rel (0) target = $region81
    $region80: #{shared_residual_mlp_output_forward.1} parent=1 // pred_region
      %182 = dma.done [#allocation11], 128
    $region81: #{shared_residual_mlp_output_forward.1} parent=1 // pred_fallthru
      _
    // Predicated region
    $region82: #{shared_residual_mlp_output_forward.1} parent=1 // pred_check
      _
    $region83: #{shared_residual_mlp_output_forward.1} parent=1 // pred_check_branch
      %184 = sbr.rel (0) target = $region85
    $region84: #{shared_residual_mlp_output_forward.1} parent=1 // pred_region
      %186 = dma.done [#allocation11], 128
    $region85: #{shared_residual_mlp_output_forward.1} parent=1 // pred_fallthru
      _
    // Predicated region
    $region86: #{shared_residual_mlp_output_forward.1} parent=1 // pred_check
      _
    $region87: #{shared_residual_mlp_output_forward.1} parent=1 // pred_check_branch
      %188 = sbr.rel (0) target = $region89
    $region88: #{shared_residual_mlp_output_forward.1} parent=1 // pred_region
      %190 = dma.done [#allocation14], 1024
    $region89: #{shared_residual_mlp_output_forward.1} parent=1 // pred_fallthru
      _
    // Predicated region
    $region90: #{shared_residual_mlp_output_forward.1} parent=1 // pred_check
      _
    $region91: #{shared_residual_mlp_output_forward.1} parent=1 // pred_check_branch
      %192 = sbr.rel (0) target = $region93
    $region92: #{shared_residual_mlp_output_forward.1} parent=1 // pred_region
      %194 = dma.done [#allocation14], 1024
    $region93: #{shared_residual_mlp_output_forward.1} parent=1 // pred_fallthru
      _
    // Predicated region
    $region94: #{shared_residual_mlp_output_forward.1} parent=1 // pred_check
      _
    $region95: #{shared_residual_mlp_output_forward.1} parent=1 // pred_check_branch
      %196 = sbr.rel (0) target = $region97
    $region96: #{shared_residual_mlp_output_forward.1} parent=1 // pred_region
      %198 = dma.done [#allocation17], 1024
    $region97: #{shared_residual_mlp_output_forward.1} parent=1 // pred_fallthru
      _
    %v199 = vld [vmem:[%s0] sm:$0xf]
    %v200 = vunpack.c.l.bf16 %v199
    %v201 = vld [vmem:[%s1] sm:$0xff]
    %v202 = vld [vmem:[%s2] sm:$0xff]
    %v203 = vld [vmem:[#allocation2] sm:$0xf]
    %v204 = vld [vmem:[#allocation2 + $0x4] sm:$0xf]
    %v205 = vld [vmem:[#allocation2 + $0x8] sm:$0xf]
    %v206 = vld [vmem:[#allocation2 + $0xc] sm:$0xf]
    %v207 = vld [vmem:[#allocation2 + $0x10] sm:$0xf]
    %v208 = vld [vmem:[#allocation2 + $0x14] sm:$0xf]
    %v209 = vld [vmem:[#allocation2 + $0x18] sm:$0xf]
    %v210 = vld [vmem:[#allocation2 + $0x1c] sm:$0xf]
    %v211 = vld [vmem:[#allocation2 + $0x20] sm:$0xf]
    %v212 = vld [vmem:[#allocation2 + $0x24] sm:$0xf]
    %v213 = vld [vmem:[#allocation2 + $0x28] sm:$0xf]
    %v214 = vld [vmem:[#allocation2 + $0x2c] sm:$0xf]
    %v215 = vld [vmem:[#allocation2 + $0x30] sm:$0xf]
    %v216 = vld [vmem:[#allocation2 + $0x34] sm:$0xf]
    %v217 = vld [vmem:[#allocation2 + $0x38] sm:$0xf]
    %v218 = vld [vmem:[#allocation2 + $0x3c] sm:$0xf]
    %v219 = vld [vmem:[#allocation4] sm:$0xf]
    %v220 = vld [vmem:[#allocation4 + $0x4] sm:$0xf]
    %v221 = vld [vmem:[#allocation4 + $0x8] sm:$0xf]
    %v222 = vld [vmem:[#allocation4 + $0xc] sm:$0xf]
    %v223 = vld [vmem:[#allocation4 + $0x10] sm:$0xf]
    %v224 = vld [vmem:[#allocation4 + $0x14] sm:$0xf]
    %v225 = vld [vmem:[#allocation4 + $0x18] sm:$0xf]
    %v226 = vld [vmem:[#allocation4 + $0x1c] sm:$0xf]
    %v227 = vld [vmem:[#allocation4 + $0x20] sm:$0xf]
    %v228 = vld [vmem:[#allocation4 + $0x24] sm:$0xf]
    %v229 = vld [vmem:[#allocation4 + $0x28] sm:$0xf]
    %v230 = vld [vmem:[#allocation4 + $0x2c] sm:$0xf]
    %v231 = vld [vmem:[#allocation4 + $0x30] sm:$0xf]
    %v232 = vld [vmem:[#allocation4 + $0x34] sm:$0xf]
    %v233 = vld [vmem:[#allocation4 + $0x38] sm:$0xf]
    %v234 = vld [vmem:[#allocation4 + $0x3c] sm:$0xf]
    %v235 = vld [vmem:[#allocation6] sm:$0xf]
    %v236 = vld [vmem:[#allocation6 + $0x4] sm:$0xf]
    %v237 = vld [vmem:[#allocation6 + $0x8] sm:$0xf]
    %v238 = vld [vmem:[#allocation6 + $0xc] sm:$0xf]
    %v239 = vld [vmem:[#allocation6 + $0x10] sm:$0xf]
    %v240 = vld [vmem:[#allocation6 + $0x14] sm:$0xf]
    %v241 = vld [vmem:[#allocation6 + $0x18] sm:$0xf]
    %v242 = vld [vmem:[#allocation6 + $0x1c] sm:$0xf]
    %v243 = vld [vmem:[#allocation6 + $0x20] sm:$0xf]
    %v244 = vld [vmem:[#allocation6 + $0x24] sm:$0xf]
    %v245 = vld [vmem:[#allocation6 + $0x28] sm:$0xf]
    %v246 = vld [vmem:[#allocation6 + $0x2c] sm:$0xf]
    %v247 = vld [vmem:[#allocation6 + $0x30] sm:$0xf]
    %v248 = vld [vmem:[#allocation6 + $0x34] sm:$0xf]
    %v249 = vld [vmem:[#allocation6 + $0x38] sm:$0xf]
    %v250 = vld [vmem:[#allocation6 + $0x3c] sm:$0xf]
    %251 = vadd.xlane.f32.xlu0 %v200
    %v252 = vpop.xlane.xlu0 %251
    %v253 = vmul.f32 %v200, %v200
    %254 = vadd.xlane.f32.xlu0 %v253
    %v255 = vpop.xlane.xlu0 %254
    %v256 = vmul.f32 %v252, 0.020833334
    %v257 = vmul.f32 %v255, 0.020833334
    %v258 = vmul.f32 %v256, %v256
    %v259 = vsub.f32 %v257, %v258
    %v260 = vsub.f32 %v200, %v256
    %v261 = vadd.f32 %v259, 1e-05
    %v262 = vrsqrt.pop %v261
    %v263 = vmul.f32 %v262, %v261
    %v264 = vmul.f32 %v263, %v262
    %v265 = vmul.f32 0.5, %v264
    %v266 = vsub.f32 1.5, %v265
    %v267 = vmul.f32 %v262, %v266
    %vm268 = vweird.f32 %v261
    %vm269 = vweird.f32 %v262
    %vm270 = vmor %vm268, %vm269
    %v271 = vsel %vm270, %v262, %v267
    %v272 = vmul.f32 %v260, %v271
    %v273 = vperm.slane %v201, 0
    %v274 = vmul.f32 %v272, %v273
    %v275 = vperm.slane %v201, 1
    %v276 = vadd.f32 %v274, %v275
    %v277 = vpack.c.bf16 %v276, %v276
    %v278 = vperm.slane %v202, 0
    %v295 = vunpack.c.l.b16 %v203
    %v296 = vunpack.c.l.b16 %v204
    %v297 = vunpack.c.l.b16 %v205
    %v298 = vunpack.c.l.b16 %v206
    %v299 = vunpack.c.l.b16 %v207
    %v300 = vunpack.c.l.b16 %v208
    %v301 = vunpack.c.l.b16 %v209
    %v302 = vunpack.c.l.b16 %v210
    %v303 = vunpack.c.l.b16 %v211
    %v304 = vunpack.c.l.b16 %v212
    %v305 = vunpack.c.l.b16 %v213
    %v306 = vunpack.c.l.b16 %v214
    %v307 = vunpack.c.l.b16 %v215
    %v308 = vunpack.c.l.b16 %v216
    %v309 = vunpack.c.l.b16 %v217
    %v310 = vunpack.c.l.b16 %v218
    %v311 = vpack.c.b16 %v296, %v295
    %v312 = vpack.c.b16 %v298, %v297
    %v313 = vpack.c.b16 %v300, %v299
    %v314 = vpack.c.b16 %v302, %v301
    %v315 = vpack.c.b16 %v304, %v303
    %v316 = vpack.c.b16 %v306, %v305
    %v317 = vpack.c.b16 %v308, %v307
    %v318 = vpack.c.b16 %v310, %v309
    %327 = vmatpush.bf16.msra.mxu0 %v318
    %328 = vmatpush.bf16.msra.mxu0 %v317
    %329 = vmatpush.bf16.msra.mxu0 %v316
    %330 = vmatpush.bf16.msra.mxu0 %v315
    %331 = vmatpush.bf16.msra.mxu0 %v314
    %332 = vmatpush.bf16.msra.mxu0 %v313
    %333 = vmatpush.bf16.msra.mxu0 %v312
    %334 = vmatpush.bf16.msra.mxu0 %v311
    %335 = vmatmul.bf16.gmra.mxu0 %v277
    %v336 = vpop.f32.mrf.mxu0
    %v337 = vadd.f32 %v278, %v336
    %v338 = vpop.f32.mrf.mxu0
    %339 = vdwg.mxu0
    %v340 = vsub.f32 0.0, %v337
    %v341 = vmul.f32 %v340, 1.442695
    %v342 = vpow.pop %v341
    %v343 = vadd.f32 %v342, 1.0
    %v344 = vrcp.pop %v343
    %v345 = vmul.f32 %v343, %v344
    %v346 = vsub.f32 1.0, %v345
    %v347 = vmul.f32 %v344, %v346
    %v348 = vadd.f32 %v344, %v347
    %vm349 = vweird.f32 %v343
    %vm350 = vweird.f32 %v344
    %vm351 = vmor %vm349, %vm350
    %v352 = vsel %vm351, %v344, %v348
    %v353 = vand.u32 2147483647, %v343
    %vm354 = vcmp.eq.f32.partialorder %v353, 8.507059e+37
    %v355 = vand.u32 %v343, 2147483648
    %v356 = vor.u32 1.1754944e-38, %v355
    %v357 = vsel %vm354, %v356, %v352
    %v358 = vmul.f32 %v337, %v357
    %v359 = vpack.c.bf16 %v358, %v358
    %v360 = vperm.slane %v202, 1
    %v377 = vunpack.c.l.b16 %v219
    %v378 = vunpack.c.l.b16 %v220
    %v379 = vunpack.c.l.b16 %v221
    %v380 = vunpack.c.l.b16 %v222
    %v381 = vunpack.c.l.b16 %v223
    %v382 = vunpack.c.l.b16 %v224
    %v383 = vunpack.c.l.b16 %v225
    %v384 = vunpack.c.l.b16 %v226
    %v385 = vunpack.c.l.b16 %v227
    %v386 = vunpack.c.l.b16 %v228
    %v387 = vunpack.c.l.b16 %v229
    %v388 = vunpack.c.l.b16 %v230
    %v389 = vunpack.c.l.b16 %v231
    %v390 = vunpack.c.l.b16 %v232
    %v391 = vunpack.c.l.b16 %v233
    %v392 = vunpack.c.l.b16 %v234
    %v393 = vpack.c.b16 %v378, %v377
    %v394 = vpack.c.b16 %v380, %v379
    %v395 = vpack.c.b16 %v382, %v381
    %v396 = vpack.c.b16 %v384, %v383
    %v397 = vpack.c.b16 %v386, %v385
    %v398 = vpack.c.b16 %v388, %v387
    %v399 = vpack.c.b16 %v390, %v389
    %v400 = vpack.c.b16 %v392, %v391
    %409 = vmatpush.bf16.msra.mxu0 %v400
    %410 = vmatpush.bf16.msra.mxu0 %v399
    %411 = vmatpush.bf16.msra.mxu0 %v398
    %412 = vmatpush.bf16.msra.mxu0 %v397
    %413 = vmatpush.bf16.msra.mxu0 %v396
    %414 = vmatpush.bf16.msra.mxu0 %v395
    %415 = vmatpush.bf16.msra.mxu0 %v394
    %416 = vmatpush.bf16.msra.mxu0 %v393
    %417 = vmatmul.bf16.gmra.mxu0 %v359
    %v418 = vpop.f32.mrf.mxu0
    %v419 = vadd.f32 %v360, %v418
    %v420 = vpop.f32.mrf.mxu0
    %421 = vdwg.mxu0
    %v422 = vperm.slane %v202, 2
    %v439 = vunpack.c.l.b16 %v235
    %v440 = vunpack.c.l.b16 %v236
    %v441 = vunpack.c.l.b16 %v237
    %v442 = vunpack.c.l.b16 %v238
    %v443 = vunpack.c.l.b16 %v239
    %v444 = vunpack.c.l.b16 %v240
    %v445 = vunpack.c.l.b16 %v241
    %v446 = vunpack.c.l.b16 %v242
    %v447 = vunpack.c.l.b16 %v243
    %v448 = vunpack.c.l.b16 %v244
    %v449 = vunpack.c.l.b16 %v245
    %v450 = vunpack.c.l.b16 %v246
    %v451 = vunpack.c.l.b16 %v247
    %v452 = vunpack.c.l.b16 %v248
    %v453 = vunpack.c.l.b16 %v249
    %v454 = vunpack.c.l.b16 %v250
    %v455 = vpack.c.b16 %v440, %v439
    %v456 = vpack.c.b16 %v442, %v441
    %v457 = vpack.c.b16 %v444, %v443
    %v458 = vpack.c.b16 %v446, %v445
    %v459 = vpack.c.b16 %v448, %v447
    %v460 = vpack.c.b16 %v450, %v449
    %v461 = vpack.c.b16 %v452, %v451
    %v462 = vpack.c.b16 %v454, %v453
    %471 = vmatpush.bf16.msra.mxu0 %v462
    %472 = vmatpush.bf16.msra.mxu0 %v461
    %473 = vmatpush.bf16.msra.mxu0 %v460
    %474 = vmatpush.bf16.msra.mxu0 %v459
    %475 = vmatpush.bf16.msra.mxu0 %v458
    %476 = vmatpush.bf16.msra.mxu0 %v457
    %477 = vmatpush.bf16.msra.mxu0 %v456
    %478 = vmatpush.bf16.msra.mxu0 %v455
    %479 = vmatmul.bf16.gmra.mxu0 %v199
    %v480 = vpop.f32.mrf.mxu0
    %v481 = vadd.f32 %v422, %v480
    %v482 = vpop.f32.mrf.mxu0
    %483 = vdwg.mxu0
    %v484 = vadd.f32 %v419, %v481
    %v485 = vld [vmem:[%s6] sm:$0xff]
    %v486 = vld [vmem:[#allocation7] sm:$0xf]
    %v487 = vld [vmem:[#allocation7 + $0x4] sm:$0xf]
    %v488 = vld [vmem:[#allocation7 + $0x8] sm:$0xf]
    %v489 = vld [vmem:[#allocation7 + $0xc] sm:$0xf]
    %v490 = vld [vmem:[#allocation7 + $0x10] sm:$0xf]
    %v491 = vld [vmem:[#allocation7 + $0x14] sm:$0xf]
    %v492 = vld [vmem:[#allocation7 + $0x18] sm:$0xf]
    %v493 = vld [vmem:[#allocation7 + $0x1c] sm:$0xf]
    %v494 = vld [vmem:[#allocation7 + $0x20] sm:$0xf]
    %v495 = vld [vmem:[#allocation7 + $0x24] sm:$0xf]
    %v496 = vld [vmem:[#allocation7 + $0x28] sm:$0xf]
    %v497 = vld [vmem:[#allocation7 + $0x2c] sm:$0xf]
    %v498 = vld [vmem:[#allocation7 + $0x30] sm:$0xf]
    %v499 = vld [vmem:[#allocation7 + $0x34] sm:$0xf]
    %v500 = vld [vmem:[#allocation7 + $0x38] sm:$0xf]
    %v501 = vld [vmem:[#allocation7 + $0x3c] sm:$0xf]
    %v502 = vld [vmem:[#allocation9] sm:$0xf]
    %v503 = vld [vmem:[#allocation9 + $0x4] sm:$0xf]
    %v504 = vld [vmem:[#allocation9 + $0x8] sm:$0xf]
    %v505 = vld [vmem:[#allocation9 + $0xc] sm:$0xf]
    %v506 = vld [vmem:[#allocation9 + $0x10] sm:$0xf]
    %v507 = vld [vmem:[#allocation9 + $0x14] sm:$0xf]
    %v508 = vld [vmem:[#allocation9 + $0x18] sm:$0xf]
    %v509 = vld [vmem:[#allocation9 + $0x1c] sm:$0xf]
    %v510 = vld [vmem:[#allocation9 + $0x20] sm:$0xf]
    %v511 = vld [vmem:[#allocation9 + $0x24] sm:$0xf]
    %v512 = vld [vmem:[#allocation9 + $0x28] sm:$0xf]
    %v513 = vld [vmem:[#allocation9 + $0x2c] sm:$0xf]
    %v514 = vld [vmem:[#allocation9 + $0x30] sm:$0xf]
    %v515 = vld [vmem:[#allocation9 + $0x34] sm:$0xf]
    %v516 = vld [vmem:[#allocation9 + $0x38] sm:$0xf]
    %v517 = vld [vmem:[#allocation9 + $0x3c] sm:$0xf]
    %518 = vadd.xlane.f32.xlu0 %v484
    %v519 = vpop.xlane.xlu0 %518
    %v520 = vmul.f32 %v484, %v484
    %521 = vadd.xlane.f32.xlu0 %v520
    %v522 = vpop.xlane.xlu0 %521
    %v523 = vmul.f32 %v519, 0.03125
    %v524 = vmul.f32 %v522, 0.03125
    %v525 = vmul.f32 %v523, %v523
    %v526 = vsub.f32 %v524, %v525
    %v527 = vsub.f32 %v484, %v523
    %v528 = vadd.f32 %v526, 1e-05
    %v529 = vrsqrt.pop %v528
    %v530 = vmul.f32 %v529, %v528
    %v531 = vmul.f32 %v530, %v529
    %v532 = vmul.f32 0.5, %v531
    %v533 = vsub.f32 1.5, %v532
    %v534 = vmul.f32 %v529, %v533
    %vm535 = vweird.f32 %v528
    %vm536 = vweird.f32 %v529
    %vm537 = vmor %vm535, %vm536
    %v538 = vsel %vm537, %v529, %v534
    %v539 = vmul.f32 %v527, %v538
    %v540 = vperm.slane %v485, 0
    %v541 = vmul.f32 %v539, %v540
    %v542 = vperm.slane %v485, 1
    %v543 = vadd.f32 %v541, %v542
    %v544 = vpack.c.bf16 %v543, %v543
    %v545 = vperm.slane %v485, 2
    %v562 = vunpack.c.l.b16 %v486
    %v563 = vunpack.c.l.b16 %v487
    %v564 = vunpack.c.l.b16 %v488
    %v565 = vunpack.c.l.b16 %v489
    %v566 = vunpack.c.l.b16 %v490
    %v567 = vunpack.c.l.b16 %v491
    %v568 = vunpack.c.l.b16 %v492
    %v569 = vunpack.c.l.b16 %v493
    %v570 = vunpack.c.l.b16 %v494
    %v571 = vunpack.c.l.b16 %v495
    %v572 = vunpack.c.l.b16 %v496
    %v573 = vunpack.c.l.b16 %v497
    %v574 = vunpack.c.l.b16 %v498
    %v575 = vunpack.c.l.b16 %v499
    %v576 = vunpack.c.l.b16 %v500
    %v577 = vunpack.c.l.b16 %v501
    %v578 = vpack.c.b16 %v563, %v562
    %v579 = vpack.c.b16 %v565, %v564
    %v580 = vpack.c.b16 %v567, %v566
    %v581 = vpack.c.b16 %v569, %v568
    %v582 = vpack.c.b16 %v571, %v570
    %v583 = vpack.c.b16 %v573, %v572
    %v584 = vpack.c.b16 %v575, %v574
    %v585 = vpack.c.b16 %v577, %v576
    %594 = vmatpush.bf16.msra.mxu0 %v585
    %595 = vmatpush.bf16.msra.mxu0 %v584
    %596 = vmatpush.bf16.msra.mxu0 %v583
    %597 = vmatpush.bf16.msra.mxu0 %v582
    %598 = vmatpush.bf16.msra.mxu0 %v581
    %599 = vmatpush.bf16.msra.mxu0 %v580
    %600 = vmatpush.bf16.msra.mxu0 %v579
    %601 = vmatpush.bf16.msra.mxu0 %v578
    %602 = vmatmul.bf16.gmra.mxu0 %v544
    %v603 = vpop.f32.mrf.mxu0
    %v604 = vadd.f32 %v545, %v603
    %v605 = vpop.f32.mrf.mxu0
    %606 = vdwg.mxu0
    %v607 = vsub.f32 0.0, %v604
    %v608 = vmul.f32 %v607, 1.442695
    %v609 = vpow.pop %v608
    %v610 = vadd.f32 %v609, 1.0
    %v611 = vrcp.pop %v610
    %v612 = vmul.f32 %v610, %v611
    %v613 = vsub.f32 1.0, %v612
    %v614 = vmul.f32 %v611, %v613
    %v615 = vadd.f32 %v611, %v614
    %vm616 = vweird.f32 %v610
    %vm617 = vweird.f32 %v611
    %vm618 = vmor %vm616, %vm617
    %v619 = vsel %vm618, %v611, %v615
    %v620 = vand.u32 2147483647, %v610
    %vm621 = vcmp.eq.f32.partialorder %v620, 8.507059e+37
    %v622 = vand.u32 %v610, 2147483648
    %v623 = vor.u32 1.1754944e-38, %v622
    %v624 = vsel %vm621, %v623, %v619
    %v625 = vmul.f32 %v604, %v624
    %v626 = vpack.c.bf16 %v625, %v625
    %v627 = vperm.slane %v485, 3
    %v644 = vunpack.c.l.b16 %v502
    %v645 = vunpack.c.l.b16 %v503
    %v646 = vunpack.c.l.b16 %v504
    %v647 = vunpack.c.l.b16 %v505
    %v648 = vunpack.c.l.b16 %v506
    %v649 = vunpack.c.l.b16 %v507
    %v650 = vunpack.c.l.b16 %v508
    %v651 = vunpack.c.l.b16 %v509
    %v652 = vunpack.c.l.b16 %v510
    %v653 = vunpack.c.l.b16 %v511
    %v654 = vunpack.c.l.b16 %v512
    %v655 = vunpack.c.l.b16 %v513
    %v656 = vunpack.c.l.b16 %v514
    %v657 = vunpack.c.l.b16 %v515
    %v658 = vunpack.c.l.b16 %v516
    %v659 = vunpack.c.l.b16 %v517
    %v660 = vpack.c.b16 %v645, %v644
    %v661 = vpack.c.b16 %v647, %v646
    %v662 = vpack.c.b16 %v649, %v648
    %v663 = vpack.c.b16 %v651, %v650
    %v664 = vpack.c.b16 %v653, %v652
    %v665 = vpack.c.b16 %v655, %v654
    %v666 = vpack.c.b16 %v657, %v656
    %v667 = vpack.c.b16 %v659, %v658
    %676 = vmatpush.bf16.msra.mxu0 %v667
    %677 = vmatpush.bf16.msra.mxu0 %v666
    %678 = vmatpush.bf16.msra.mxu0 %v665
    %679 = vmatpush.bf16.msra.mxu0 %v664
    %680 = vmatpush.bf16.msra.mxu0 %v663
    %681 = vmatpush.bf16.msra.mxu0 %v662
    %682 = vmatpush.bf16.msra.mxu0 %v661
    %683 = vmatpush.bf16.msra.mxu0 %v660
    %684 = vmatmul.bf16.gmra.mxu0 %v626
    %v685 = vpop.f32.mrf.mxu0
    %v686 = vadd.f32 %v627, %v685
    %v687 = vpop.f32.mrf.mxu0
    %688 = vdwg.mxu0
    %v689 = vadd.f32 %v686, %v484
    %v690 = vld [vmem:[#allocation10] sm:$0xff]
    %v691 = vld [vmem:[#allocation12] sm:$0xff]
    %v692 = vld [vmem:[#allocation13] sm:$0xf]
    %v693 = vld [vmem:[#allocation13 + $0x4] sm:$0xf]
    %v694 = vld [vmem:[#allocation13 + $0x8] sm:$0xf]
    %v695 = vld [vmem:[#allocation13 + $0xc] sm:$0xf]
    %v696 = vld [vmem:[#allocation13 + $0x10] sm:$0xf]
    %v697 = vld [vmem:[#allocation13 + $0x14] sm:$0xf]
    %v698 = vld [vmem:[#allocation13 + $0x18] sm:$0xf]
    %v699 = vld [vmem:[#allocation13 + $0x1c] sm:$0xf]
    %v700 = vld [vmem:[#allocation13 + $0x20] sm:$0xf]
    %v701 = vld [vmem:[#allocation13 + $0x24] sm:$0xf]
    %v702 = vld [vmem:[#allocation13 + $0x28] sm:$0xf]
    %v703 = vld [vmem:[#allocation13 + $0x2c] sm:$0xf]
    %v704 = vld [vmem:[#allocation13 + $0x30] sm:$0xf]
    %v705 = vld [vmem:[#allocation13 + $0x34] sm:$0xf]
    %v706 = vld [vmem:[#allocation13 + $0x38] sm:$0xf]
    %v707 = vld [vmem:[#allocation13 + $0x3c] sm:$0xf]
    %v708 = vld [vmem:[#allocation15] sm:$0xf]
    %v709 = vld [vmem:[#allocation15 + $0x4] sm:$0xf]
    %v710 = vld [vmem:[#allocation15 + $0x8] sm:$0xf]
    %v711 = vld [vmem:[#allocation15 + $0xc] sm:$0xf]
    %v712 = vld [vmem:[#allocation15 + $0x10] sm:$0xf]
    %v713 = vld [vmem:[#allocation15 + $0x14] sm:$0xf]
    %v714 = vld [vmem:[#allocation15 + $0x18] sm:$0xf]
    %v715 = vld [vmem:[#allocation15 + $0x1c] sm:$0xf]
    %v716 = vld [vmem:[#allocation15 + $0x20] sm:$0xf]
    %v717 = vld [vmem:[#allocation15 + $0x24] sm:$0xf]
    %v718 = vld [vmem:[#allocation15 + $0x28] sm:$0xf]
    %v719 = vld [vmem:[#allocation15 + $0x2c] sm:$0xf]
    %v720 = vld [vmem:[#allocation15 + $0x30] sm:$0xf]
    %v721 = vld [vmem:[#allocation15 + $0x34] sm:$0xf]
    %v722 = vld [vmem:[#allocation15 + $0x38] sm:$0xf]
    %v723 = vld [vmem:[#allocation15 + $0x3c] sm:$0xf]
    %v724 = vld [vmem:[#allocation16] sm:$0xf]
    %v725 = vld [vmem:[#allocation16 + $0x4] sm:$0xf]
    %v726 = vld [vmem:[#allocation16 + $0x8] sm:$0xf]
    %v727 = vld [vmem:[#allocation16 + $0xc] sm:$0xf]
    %v728 = vld [vmem:[#allocation16 + $0x10] sm:$0xf]
    %v729 = vld [vmem:[#allocation16 + $0x14] sm:$0xf]
    %v730 = vld [vmem:[#allocation16 + $0x18] sm:$0xf]
    %v731 = vld [vmem:[#allocation16 + $0x1c] sm:$0xf]
    %v732 = vld [vmem:[#allocation16 + $0x20] sm:$0xf]
    %v733 = vld [vmem:[#allocation16 + $0x24] sm:$0xf]
    %v734 = vld [vmem:[#allocation16 + $0x28] sm:$0xf]
    %v735 = vld [vmem:[#allocation16 + $0x2c] sm:$0xf]
    %v736 = vld [vmem:[#allocation16 + $0x30] sm:$0xf]
    %v737 = vld [vmem:[#allocation16 + $0x34] sm:$0xf]
    %v738 = vld [vmem:[#allocation16 + $0x38] sm:$0xf]
    %v739 = vld [vmem:[#allocation16 + $0x3c] sm:$0xf]
    %740 = vadd.xlane.f32.xlu0 %v689
    %v741 = vpop.xlane.xlu0 %740
    %v742 = vmul.f32 %v689, %v689
    %743 = vadd.xlane.f32.xlu0 %v742
    %v744 = vpop.xlane.xlu0 %743
    %v745 = vmul.f32 %v741, 0.03125
    %v746 = vmul.f32 %v744, 0.03125
    %v747 = vmul.f32 %v745, %v745
    %v748 = vsub.f32 %v746, %v747
    %v749 = vsub.f32 %v689, %v745
    %v750 = vadd.f32 %v748, 1e-05
    %v751 = vrsqrt.pop %v750
    %v752 = vmul.f32 %v751, %v750
    %v753 = vmul.f32 %v752, %v751
    %v754 = vmul.f32 0.5, %v753
    %v755 = vsub.f32 1.5, %v754
    %v756 = vmul.f32 %v751, %v755
    %vm757 = vweird.f32 %v750
    %vm758 = vweird.f32 %v751
    %vm759 = vmor %vm757, %vm758
    %v760 = vsel %vm759, %v751, %v756
    %v761 = vmul.f32 %v749, %v760
    %v762 = vperm.slane %v690, 0
    %v763 = vmul.f32 %v761, %v762
    %v764 = vperm.slane %v690, 1
    %v765 = vadd.f32 %v763, %v764
    %v766 = vpack.c.bf16 %v765, %v765
    %v767 = vperm.slane %v691, 0
    %v784 = vunpack.c.l.b16 %v692
    %v785 = vunpack.c.l.b16 %v693
    %v786 = vunpack.c.l.b16 %v694
    %v787 = vunpack.c.l.b16 %v695
    %v788 = vunpack.c.l.b16 %v696
    %v789 = vunpack.c.l.b16 %v697
    %v790 = vunpack.c.l.b16 %v698
    %v791 = vunpack.c.l.b16 %v699
    %v792 = vunpack.c.l.b16 %v700
    %v793 = vunpack.c.l.b16 %v701
    %v794 = vunpack.c.l.b16 %v702
    %v795 = vunpack.c.l.b16 %v703
    %v796 = vunpack.c.l.b16 %v704
    %v797 = vunpack.c.l.b16 %v705
    %v798 = vunpack.c.l.b16 %v706
    %v799 = vunpack.c.l.b16 %v707
    %v800 = vpack.c.b16 %v785, %v784
    %v801 = vpack.c.b16 %v787, %v786
    %v802 = vpack.c.b16 %v789, %v788
    %v803 = vpack.c.b16 %v791, %v790
    %v804 = vpack.c.b16 %v793, %v792
    %v805 = vpack.c.b16 %v795, %v794
    %v806 = vpack.c.b16 %v797, %v796
    %v807 = vpack.c.b16 %v799, %v798
    %816 = vmatpush.bf16.msra.mxu0 %v807
    %817 = vmatpush.bf16.msra.mxu0 %v806
    %818 = vmatpush.bf16.msra.mxu0 %v805
    %819 = vmatpush.bf16.msra.mxu0 %v804
    %820 = vmatpush.bf16.msra.mxu0 %v803
    %821 = vmatpush.bf16.msra.mxu0 %v802
    %822 = vmatpush.bf16.msra.mxu0 %v801
    %823 = vmatpush.bf16.msra.mxu0 %v800
    %824 = vmatmul.bf16.gmra.mxu0 %v766
    %v825 = vpop.f32.mrf.mxu0
    %v826 = vadd.f32 %v767, %v825
    %v827 = vpop.f32.mrf.mxu0
    %828 = vdwg.mxu0
    %v829 = vsub.f32 0.0, %v826
    %v830 = vmul.f32 %v829, 1.442695
    %v831 = vpow.pop %v830
    %v832 = vadd.f32 %v831, 1.0
    %v833 = vrcp.pop %v832
    %v834 = vmul.f32 %v832, %v833
    %v835 = vsub.f32 1.0, %v834
    %v836 = vmul.f32 %v833, %v835
    %v837 = vadd.f32 %v833, %v836
    %vm838 = vweird.f32 %v832
    %vm839 = vweird.f32 %v833
    %vm840 = vmor %vm838, %vm839
    %v841 = vsel %vm840, %v833, %v837
    %v842 = vand.u32 2147483647, %v832
    %vm843 = vcmp.eq.f32.partialorder %v842, 8.507059e+37
    %v844 = vand.u32 %v832, 2147483648
    %v845 = vor.u32 1.1754944e-38, %v844
    %v846 = vsel %vm843, %v845, %v841
    %v847 = vmul.f32 %v826, %v846
    %v848 = vpack.c.bf16 %v847, %v847
    %v849 = vperm.slane %v691, 1
    %v866 = vunpack.c.l.b16 %v708
    %v867 = vunpack.c.l.b16 %v709
    %v868 = vunpack.c.l.b16 %v710
    %v869 = vunpack.c.l.b16 %v711
    %v870 = vunpack.c.l.b16 %v712
    %v871 = vunpack.c.l.b16 %v713
    %v872 = vunpack.c.l.b16 %v714
    %v873 = vunpack.c.l.b16 %v715
    %v874 = vunpack.c.l.b16 %v716
    %v875 = vunpack.c.l.b16 %v717
    %v876 = vunpack.c.l.b16 %v718
    %v877 = vunpack.c.l.b16 %v719
    %v878 = vunpack.c.l.b16 %v720
    %v879 = vunpack.c.l.b16 %v721
    %v880 = vunpack.c.l.b16 %v722
    %v881 = vunpack.c.l.b16 %v723
    %v882 = vpack.c.b16 %v867, %v866
    %v883 = vpack.c.b16 %v869, %v868
    %v884 = vpack.c.b16 %v871, %v870
    %v885 = vpack.c.b16 %v873, %v872
    %v886 = vpack.c.b16 %v875, %v874
    %v887 = vpack.c.b16 %v877, %v876
    %v888 = vpack.c.b16 %v879, %v878
    %v889 = vpack.c.b16 %v881, %v880
    %898 = vmatpush.bf16.msra.mxu0 %v889
    %899 = vmatpush.bf16.msra.mxu0 %v888
    %900 = vmatpush.bf16.msra.mxu0 %v887
    %901 = vmatpush.bf16.msra.mxu0 %v886
    %902 = vmatpush.bf16.msra.mxu0 %v885
    %903 = vmatpush.bf16.msra.mxu0 %v884
    %904 = vmatpush.bf16.msra.mxu0 %v883
    %905 = vmatpush.bf16.msra.mxu0 %v882
    %906 = vmatmul.bf16.gmra.mxu0 %v848
    %v907 = vpop.f32.mrf.mxu0
    %v908 = vadd.f32 %v849, %v907
    %v909 = vpop.f32.mrf.mxu0
    %910 = vdwg.mxu0
    %v911 = vpack.c.bf16 %v689, %v689
    %v912 = vperm.slane %v691, 2
    %v929 = vunpack.c.l.b16 %v724
    %v930 = vunpack.c.l.b16 %v725
    %v931 = vunpack.c.l.b16 %v726
    %v932 = vunpack.c.l.b16 %v727
    %v933 = vunpack.c.l.b16 %v728
    %v934 = vunpack.c.l.b16 %v729
    %v935 = vunpack.c.l.b16 %v730
    %v936 = vunpack.c.l.b16 %v731
    %v937 = vunpack.c.l.b16 %v732
    %v938 = vunpack.c.l.b16 %v733
    %v939 = vunpack.c.l.b16 %v734
    %v940 = vunpack.c.l.b16 %v735
    %v941 = vunpack.c.l.b16 %v736
    %v942 = vunpack.c.l.b16 %v737
    %v943 = vunpack.c.l.b16 %v738
    %v944 = vunpack.c.l.b16 %v739
    %v945 = vpack.c.b16 %v930, %v929
    %v946 = vpack.c.b16 %v932, %v931
    %v947 = vpack.c.b16 %v934, %v933
    %v948 = vpack.c.b16 %v936, %v935
    %v949 = vpack.c.b16 %v938, %v937
    %v950 = vpack.c.b16 %v940, %v939
    %v951 = vpack.c.b16 %v942, %v941
    %v952 = vpack.c.b16 %v944, %v943
    %961 = vmatpush.bf16.msra.mxu0 %v952
    %962 = vmatpush.bf16.msra.mxu0 %v951
    %963 = vmatpush.bf16.msra.mxu0 %v950
    %964 = vmatpush.bf16.msra.mxu0 %v949
    %965 = vmatpush.bf16.msra.mxu0 %v948
    %966 = vmatpush.bf16.msra.mxu0 %v947
    %967 = vmatpush.bf16.msra.mxu0 %v946
    %968 = vmatpush.bf16.msra.mxu0 %v945
    %969 = vmatmul.bf16.gmra.mxu0 %v911
    %v970 = vpop.f32.mrf.mxu0
    %v971 = vadd.f32 %v912, %v970
    %v972 = vpop.f32.mrf.mxu0
    %973 = vdwg.mxu0
    %v974 = vadd.f32 %v908, %v971
    %975 = vst [vmem:[%s14] sm:$0xff] %v974
    // Predicated region
    $region98: #{shared_residual_mlp_output_forward.1} parent=1 // pred_check
      _
    $region99: #{shared_residual_mlp_output_forward.1} parent=1 // pred_check_branch
      %977 = sbr.rel (0) target = $region101
    $region100: #{shared_residual_mlp_output_forward.1} parent=1 // pred_region
      _
    $region101: #{shared_residual_mlp_output_forward.1} parent=1 // pred_fallthru
      _
    // Predicated region
    $region102: #{shared_residual_mlp_output_forward.1} parent=1 // pred_check
      _
    $region103: #{shared_residual_mlp_output_forward.1} parent=1 // pred_check_branch
      %979 = sbr.rel (0) target = $region105
    $region104: #{shared_residual_mlp_output_forward.1} parent=1 // pred_region
      _
    $region105: #{shared_residual_mlp_output_forward.1} parent=1 // pred_fallthru
      _
    %980 = vsyncpa [#allocation3], 1
    %981 = vsyncpa [#allocation5], 1
    %982 = vsyncpa [#allocation8], 1
    %983 = vsyncpa [#allocation11], 1
    %984 = vsyncpa [#allocation14], 1
    %985 = vsyncpa [#allocation17], 1

</llo_original>
